<compile_context>
chip_gen: v6e
topology: v6e:2x2x1
jax: 0.10.0
libtpu: 0.0.40
codegen_flags: <defaults>
</compile_context>

<pallas_src>
import functools
import math

import jax
import jax.numpy as jnp
from jax.experimental import pallas as pl
from jax.experimental.pallas import tpu as pltpu

_LANE = 128
_SUBLANE = 8
_HIGH = jax.lax.Precision.HIGHEST


def _round_up(x, m):
    return (x + m - 1) // m * m


def _fused_kernel(x_ref, w1_ref, b1_ref, w2_ref, b2_ref, w3_ref, b3_ref, o_ref,
                  *, input_dim, layer1_on_vpu):
    """VPU layer-1 (K tiny) + 2 dependent MXU matmuls; mat/lt_inv folded in wrapper."""
    x = x_ref[...]

    if layer1_on_vpu:
        # K = input_dim is tiny (<= 8): K broadcast multiply-adds on the VPU
        # instead of an MXU matmul.  Static Python unroll.
        pre1 = b1_ref[...]                                   # (1, hidden), broadcasts below
        for k in range(input_dim):
            pre1 = pre1 + x[:, k:k + 1] * w1_ref[k:k + 1, :]  # (tb,1)*(1,hidden)
        h1 = jnp.tanh(pre1)
    else:
        h1 = jnp.tanh(
            jnp.dot(x, w1_ref[...], preferred_element_type=jnp.float32,
                    precision=_HIGH) + b1_ref[...])

    h2 = jnp.tanh(
        jnp.dot(h1, w2_ref[...], preferred_element_type=jnp.float32,
                precision=_HIGH) + b2_ref[...])

    # Natural-width output store (no lane padding): 16 B/row of useful data only.
    o_ref[...] = (
        jnp.dot(h2, w3_ref[...], preferred_element_type=jnp.float32,
                precision=_HIGH) + b3_ref[...])


def _pick_batch_tiling(batch, batch_tile):
    """Pick (tb, batch_pad): tb multiple of 8, tb | batch_pad, minimal waste.

    Prefers grid >= 2 when the batch allows it (so v7x shards tiles across both
    TensorCores); among candidates, minimizes padded rows + per-step overhead.
    """
    batch8 = _round_up(max(batch, 1), _SUBLANE)
    cap = min(batch_tile, batch8)
    if batch8 >= 2 * _SUBLANE:
        # Force at least 2 grid steps (one extra ~0.35 us step on 1-TC chips,
        # up to ~2x on v7x mid-size batches).
        cap = min(cap, _round_up((batch8 + 1) // 2, _SUBLANE))
    cap = max(_SUBLANE, cap - (cap % _SUBLANE))

    best_tb, best_cost = _SUBLANE, None
    for tb in range(_SUBLANE, cap + 1, _SUBLANE):
        padded = _round_up(batch8, tb)
        steps = padded // tb
        # Cost model: rows actually processed + ~0.35 us/grid-step expressed as
        # an equivalent number of rows of this tiny MLP.
        cost = padded + 32 * steps
        if best_cost is None or cost <= best_cost:   # ties -> larger tile
            best_tb, best_cost = tb, cost
    return best_tb, _round_up(batch8, best_tb)


def linear_transformed_forward(x, params, *, batch_tile=1024, use_pallas=None,
                               min_pallas_batch=1024):
    """Fused forward: fold outer linear maps, tile batch, resident weights."""
    batch, input_dim = x.shape
    output_dim = params["wl"].shape[1]

    # --- algebraic fold of mat / lt_inv into the first/last layer (plain JAX, tiny) ---
    w1_eff = jnp.dot(params["mat"], params["w1"], precision=_HIGH)                # [in, hidden]
    w3_eff = jnp.dot(params["w3"], params["wl"], precision=_HIGH)                 # [hidden, out]
    b3_eff = jnp.dot(params["b3"], params["wl"], precision=_HIGH) + params["bl"]  # [1, out]

    if use_pallas is None:
        use_pallas = batch >= min_pallas_batch
    if not use_pallas:
        # Tiny batches: custom-call + grid/DMA overhead dominates; let XLA fuse it.
        h1 = jnp.tanh(jnp.dot(x, w1_eff, precision=_HIGH) + params["b1"])
        h2 = jnp.tanh(jnp.dot(h1, params["w2"], precision=_HIGH) + params["b2"])
        return jnp.dot(h2, w3_eff, precision=_HIGH) + b3_eff

    # --- batch tiling: pad only to a multiple of 8, tile divides padded batch ---
    tb, batch_pad = _pick_batch_tiling(batch, batch_tile)
    if batch_pad != batch:
        x = jnp.pad(x, ((0, batch_pad - batch), (0, 0)))
    grid = (batch_pad // tb,)

    def _resident(shape):
        # Weights/biases: full-array block, same block every grid step -> stays in VMEM.
        return pl.BlockSpec(shape, lambda i: (0, 0))

    kernel = functools.partial(
        _fused_kernel,
        input_dim=input_dim,
        layer1_on_vpu=(input_dim <= _SUBLANE),
    )

    out = pl.pallas_call(
        kernel,
        out_shape=jax.ShapeDtypeStruct((batch_pad, output_dim), jnp.float32),
        grid_spec=pltpu.PrefetchScalarGridSpec(
            num_scalar_prefetch=0,
            grid=grid,
            in_specs=[
                pl.BlockSpec((tb, input_dim), lambda i: (i, 0)),   # x tile streamed
                _resident(w1_eff.shape),
                _resident(params["b1"].shape),
                _resident(params["w2"].shape),
                _resident(params["b2"].shape),
                _resident(w3_eff.shape),
                _resident(b3_eff.shape),
            ],
            out_specs=pl.BlockSpec((tb, output_dim), lambda i: (i, 0)),
        ),
        compiler_params=pltpu.CompilerParams(
            dimension_semantics=("parallel",)),     # shards batch tiles across v7x TCs
    )(x, w1_eff, params["b1"], params["w2"], params["b2"], w3_eff, b3_eff)

    return out[:batch]


def init_params(key, input_dim, hidden_dim, output_dim):
    """Deterministic init mirroring the PyTorch module's __init__ shapes.

    mat  : identity [input_dim, input_dim]
    old_model: Linear(input_dim, hidden) -> tanh -> Linear(hidden, hidden) -> tanh
               -> Linear(hidden, output_dim)   (weights stored as [in, out])
    lt_inv: Linear(output_dim, output_dim)
    """
    ks = jax.random.split(key, 8)

    def linear_init(kw, kb, fan_in, fan_out):
        bound = 1.0 / math.sqrt(fan_in)
        w = jax.random.uniform(kw, (fan_in, fan_out), jnp.float32, -bound, bound)
        b = jax.random.uniform(kb, (1, fan_out), jnp.float32, -bound, bound)
        return w, b

    w1, b1 = linear_init(ks[0], ks[1], input_dim, hidden_dim)
    w2, b2 = linear_init(ks[2], ks[3], hidden_dim, hidden_dim)
    w3, b3 = linear_init(ks[4], ks[5], hidden_dim, output_dim)
    wl, bl = linear_init(ks[6], ks[7], output_dim, output_dim)

    return {
        "mat": jnp.eye(input_dim, dtype=jnp.float32),
        "w1": w1, "b1": b1,
        "w2": w2, "b2": b2,
        "w3": w3, "b3": b3,
        "wl": wl, "bl": bl,
    }


def reference_forward(x, p):
    """Pure-JAX reference matching the unfolded PyTorch forward (fp32 matmuls)."""
    trans_in = jnp.dot(x, p["mat"], precision=_HIGH)
    h1 = jnp.tanh(jnp.dot(trans_in, p["w1"], precision=_HIGH) + p["b1"])
    h2 = jnp.tanh(jnp.dot(h1, p["w2"], precision=_HIGH) + p["b2"])
    out = jnp.dot(h2, p["w3"], precision=_HIGH) + p["b3"]
    return jnp.dot(out, p["wl"], precision=_HIGH) + p["bl"]


if __name__ == "__main__":
    batch, input_dim, hidden_dim, output_dim = 8, 4, 32, 4

    key = jax.random.PRNGKey(0)
    k_x, k_p, k_x2 = jax.random.split(key, 3)

    x = jax.random.normal(k_x, (batch, input_dim), dtype=jnp.float32)
    params = init_params(k_p, input_dim, hidden_dim, output_dim)

    # Force the Pallas path (auto-dispatch would use the XLA fallback at this size).
    y = linear_transformed_forward(x, params, use_pallas=True)
    y = jax.block_until_ready(y)
    y_ref = reference_forward(x, params)
    assert y.shape == (batch, output_dim)
    assert jnp.allclose(y, y_ref, atol=1e-5, rtol=1e-5)

    # Second check: non-tile-aligned batch exercising a multi-step grid (grid >= 2).
    batch2 = 300
    x2 = jax.random.normal(k_x2, (batch2, input_dim), dtype=jnp.float32)
    y2 = jax.block_until_ready(linear_transformed_forward(x2, params, use_pallas=True))
    y2_ref = reference_forward(x2, params)
    assert y2.shape == (batch2, output_dim)
    assert jnp.allclose(y2, y2_ref, atol=1e-5, rtol=1e-5)

    print("KERNEL_OK")
</pallas_src>

<mosaic_0001>
module attributes {stable_mosaic.version = 11 : i64} {
  func.func @_fused_kernel(%arg0: i32, %arg1: memref<8x4xf32, #tpu.memory_space<vmem>>, %arg2: memref<4x32xf32, #tpu.memory_space<vmem>>, %arg3: memref<1x32xf32, #tpu.memory_space<vmem>>, %arg4: memref<32x32xf32, #tpu.memory_space<vmem>>, %arg5: memref<1x32xf32, #tpu.memory_space<vmem>>, %arg6: memref<32x4xf32, #tpu.memory_space<vmem>>, %arg7: memref<1x4xf32, #tpu.memory_space<vmem>>, %arg8: memref<8x4xf32, #tpu.memory_space<vmem>>) attributes {dimension_semantics = [#tpu.dimension_semantics<parallel>], iteration_bounds = array<i64: 1>, scalar_prefetch = 0 : i64, scratch_operands = 0 : i64, tpu.core_type = #tpu.core_type<tc>, window_params = [{transform_indices = @transform_0, window_bounds = array<i64: 8, 4>}, {pipeline_mode = #tpu.pipeline_mode<synchronous>, transform_indices = @transform_1, window_bounds = array<i64: 4, 32>}, {pipeline_mode = #tpu.pipeline_mode<synchronous>, transform_indices = @transform_2, window_bounds = array<i64: 1, 32>}, {pipeline_mode = #tpu.pipeline_mode<synchronous>, transform_indices = @transform_3, window_bounds = array<i64: 32, 32>}, {pipeline_mode = #tpu.pipeline_mode<synchronous>, transform_indices = @transform_4, window_bounds = array<i64: 1, 32>}, {pipeline_mode = #tpu.pipeline_mode<synchronous>, transform_indices = @transform_5, window_bounds = array<i64: 32, 4>}, {pipeline_mode = #tpu.pipeline_mode<synchronous>, transform_indices = @transform_6, window_bounds = array<i64: 1, 4>}, {transform_indices = @transform_7, window_bounds = array<i64: 8, 4>}]} {
    %c0 = arith.constant 0 : index
    %c0_0 = arith.constant 0 : index
    %0 = vector.load %arg1[%c0, %c0_0] : memref<8x4xf32, #tpu.memory_space<vmem>>, vector<8x4xf32>
    %c0_1 = arith.constant 0 : index
    %c0_2 = arith.constant 0 : index
    %1 = vector.load %arg3[%c0_1, %c0_2] : memref<1x32xf32, #tpu.memory_space<vmem>>, vector<1x32xf32>
    %2 = vector.extract_strided_slice %0 {offsets = [0, 0], sizes = [8, 1], strides = [1, 1]} : vector<8x4xf32> to vector<8x1xf32>
    %c0_3 = arith.constant 0 : index
    %c0_4 = arith.constant 0 : index
    %3 = vector.load %arg2[%c0_3, %c0_4] : memref<4x32xf32, #tpu.memory_space<vmem>>, vector<1x32xf32>
    %4 = vector.broadcast %2 : vector<8x1xf32> to vector<8x32xf32>
    %5 = vector.broadcast %3 : vector<1x32xf32> to vector<8x32xf32>
    %6 = arith.mulf %4, %5 : vector<8x32xf32>
    %7 = vector.broadcast %1 : vector<1x32xf32> to vector<8x32xf32>
    %8 = arith.addf %7, %6 : vector<8x32xf32>
    %9 = vector.extract_strided_slice %0 {offsets = [0, 1], sizes = [8, 1], strides = [1, 1]} : vector<8x4xf32> to vector<8x1xf32>
    %c1 = arith.constant 1 : index
    %c0_5 = arith.constant 0 : index
    %10 = vector.load %arg2[%c1, %c0_5] : memref<4x32xf32, #tpu.memory_space<vmem>>, vector<1x32xf32>
    %11 = vector.broadcast %9 : vector<8x1xf32> to vector<8x32xf32>
    %12 = vector.broadcast %10 : vector<1x32xf32> to vector<8x32xf32>
    %13 = arith.mulf %11, %12 : vector<8x32xf32>
    %14 = arith.addf %8, %13 : vector<8x32xf32>
    %15 = vector.extract_strided_slice %0 {offsets = [0, 2], sizes = [8, 1], strides = [1, 1]} : vector<8x4xf32> to vector<8x1xf32>
    %c2 = arith.constant 2 : index
    %c0_6 = arith.constant 0 : index
    %16 = vector.load %arg2[%c2, %c0_6] : memref<4x32xf32, #tpu.memory_space<vmem>>, vector<1x32xf32>
    %17 = vector.broadcast %15 : vector<8x1xf32> to vector<8x32xf32>
    %18 = vector.broadcast %16 : vector<1x32xf32> to vector<8x32xf32>
    %19 = arith.mulf %17, %18 : vector<8x32xf32>
    %20 = arith.addf %14, %19 : vector<8x32xf32>
    %21 = vector.extract_strided_slice %0 {offsets = [0, 3], sizes = [8, 1], strides = [1, 1]} : vector<8x4xf32> to vector<8x1xf32>
    %c3 = arith.constant 3 : index
    %c0_7 = arith.constant 0 : index
    %22 = vector.load %arg2[%c3, %c0_7] : memref<4x32xf32, #tpu.memory_space<vmem>>, vector<1x32xf32>
    %23 = vector.broadcast %21 : vector<8x1xf32> to vector<8x32xf32>
    %24 = vector.broadcast %22 : vector<1x32xf32> to vector<8x32xf32>
    %25 = arith.mulf %23, %24 : vector<8x32xf32>
    %26 = arith.addf %20, %25 : vector<8x32xf32>
    %27 = math.tanh %26 : vector<8x32xf32>
    %c0_8 = arith.constant 0 : index
    %c0_9 = arith.constant 0 : index
    %28 = vector.load %arg4[%c0_8, %c0_9] : memref<32x32xf32, #tpu.memory_space<vmem>>, vector<32x32xf32>
    %cst = arith.constant dense<0.000000e+00> : vector<8x32xf32>
    %29 = tpu.matmul %27, %28, %cst {dimension_numbers = #tpu.dot_dimension_numbers<[1], [0], [0], [1], [0, 0, 1, 1], [], []>, precision = #tpu.contract_precision<fp32>} : vector<8x32xf32>, vector<32x32xf32>, vector<8x32xf32> -> vector<8x32xf32>
    %c0_10 = arith.constant 0 : index
    %c0_11 = arith.constant 0 : index
    %30 = vector.load %arg5[%c0_10, %c0_11] : memref<1x32xf32, #tpu.memory_space<vmem>>, vector<1x32xf32>
    %31 = vector.broadcast %30 : vector<1x32xf32> to vector<8x32xf32>
    %32 = arith.addf %29, %31 : vector<8x32xf32>
    %33 = math.tanh %32 : vector<8x32xf32>
    %c0_12 = arith.constant 0 : index
    %c0_13 = arith.constant 0 : index
    %34 = vector.load %arg6[%c0_12, %c0_13] : memref<32x4xf32, #tpu.memory_space<vmem>>, vector<32x4xf32>
    %cst_14 = arith.constant dense<0.000000e+00> : vector<8x4xf32>
    %35 = tpu.matmul %33, %34, %cst_14 {dimension_numbers = #tpu.dot_dimension_numbers<[1], [0], [0], [1], [0, 0, 1, 1], [], []>, precision = #tpu.contract_precision<fp32>} : vector<8x32xf32>, vector<32x4xf32>, vector<8x4xf32> -> vector<8x4xf32>
    %c0_15 = arith.constant 0 : index
    %c0_16 = arith.constant 0 : index
    %36 = vector.load %arg7[%c0_15, %c0_16] : memref<1x4xf32, #tpu.memory_space<vmem>>, vector<1x4xf32>
    %37 = vector.broadcast %36 : vector<1x4xf32> to vector<8x4xf32>
    %38 = arith.addf %35, %37 : vector<8x4xf32>
    %c0_17 = arith.constant 0 : index
    %c0_18 = arith.constant 0 : index
    %39 = vector.load %arg8[%c0_17, %c0_18] : memref<8x4xf32, #tpu.memory_space<vmem>>, vector<8x4xf32>
    tpu.vector_store %arg8[%c0_17, %c0_18], %38 {strides = array<i32>} : memref<8x4xf32, #tpu.memory_space<vmem>>, vector<8x4xf32>,
    return
  }
  func.func @transform_0(%arg0: i32) -> (i32, i32) {
    %c0_i32 = arith.constant 0 : i32
    %c0_i32_0 = arith.constant 0 : i32
    return %arg0, %c0_i32 : i32, i32
  }
  func.func @transform_1(%arg0: i32) -> (i32, i32) {
    %c0_i32 = arith.constant 0 : i32
    %c0_i32_0 = arith.constant 0 : i32
    %c0_i32_1 = arith.constant 0 : i32
    return %c0_i32, %c0_i32_0 : i32, i32
  }
  func.func @transform_2(%arg0: i32) -> (i32, i32) {
    %c0_i32 = arith.constant 0 : i32
    %c0_i32_0 = arith.constant 0 : i32
    %c0_i32_1 = arith.constant 0 : i32
    return %c0_i32, %c0_i32_0 : i32, i32
  }
  func.func @transform_3(%arg0: i32) -> (i32, i32) {
    %c0_i32 = arith.constant 0 : i32
    %c0_i32_0 = arith.constant 0 : i32
    %c0_i32_1 = arith.constant 0 : i32
    return %c0_i32, %c0_i32_0 : i32, i32
  }
  func.func @transform_4(%arg0: i32) -> (i32, i32) {
    %c0_i32 = arith.constant 0 : i32
    %c0_i32_0 = arith.constant 0 : i32
    %c0_i32_1 = arith.constant 0 : i32
    return %c0_i32, %c0_i32_0 : i32, i32
  }
  func.func @transform_5(%arg0: i32) -> (i32, i32) {
    %c0_i32 = arith.constant 0 : i32
    %c0_i32_0 = arith.constant 0 : i32
    %c0_i32_1 = arith.constant 0 : i32
    return %c0_i32, %c0_i32_0 : i32, i32
  }
  func.func @transform_6(%arg0: i32) -> (i32, i32) {
    %c0_i32 = arith.constant 0 : i32
    %c0_i32_0 = arith.constant 0 : i32
    %c0_i32_1 = arith.constant 0 : i32
    return %c0_i32, %c0_i32_0 : i32, i32
  }
  func.func @transform_7(%arg0: i32) -> (i32, i32) {
    %c0_i32 = arith.constant 0 : i32
    %c0_i32_0 = arith.constant 0 : i32
    return %arg0, %c0_i32 : i32, i32
  }
}

</mosaic_0001>

<llo_original>
// kernel: tpu_custom_call.1
$region0: #{tpu_custom_call.1}
  #allocation0 [shape = 'u32[]', space=smem, size = 0x4, offset = 0x4, fixed_abs, tag = 'smem constant byte address 0x4 - core index']
  #allocation1 [shape = 'u32[144,128]{1,0:T(1,128)}', space=vmem, size = 0x12000, scoped, tag = 'internal scratch']
  %s0 = inlined_call_operand.vmem [shape: f32[8,4], index: 0, kind: input, shape index: {}]
  %s1 = inlined_call_operand.vmem [shape: f32[4,32], index: 1, kind: input, shape index: {}]
  %s2 = inlined_call_operand.vmem [shape: f32[1,32], index: 2, kind: input, shape index: {}]
  %s3 = inlined_call_operand.vmem [shape: f32[32,32], index: 3, kind: input, shape index: {}]
  %s4 = inlined_call_operand.vmem [shape: f32[1,32], index: 4, kind: input, shape index: {}]
  %s5 = inlined_call_operand.vmem [shape: f32[32,4], index: 5, kind: input, shape index: {}]
  %s6 = inlined_call_operand.vmem [shape: f32[1,4], index: 6, kind: input, shape index: {}]
  %s7 = inlined_call_operand.vmem [shape: f32[8,4], index: 7, kind: output, shape index: {}]
  %s8 = sld [smem:[#allocation0]]
  $region38: #{tpu_custom_call.1} parent=0
    _
  %s10 = ssub.s32 1, %s8
  %s11 = scalar_select 0, %s10, %s8
  // Predicated region
  $region2: #{tpu_custom_call.1} parent=0 // pred_check
    _
  $region3: #{tpu_custom_call.1} parent=0 // pred_check_branch
    %13 = sbr.rel (0) target = $region5
  $region4: #{tpu_custom_call.1} parent=0 // pred_region
    _
  $region5: #{tpu_custom_call.1} parent=0 // pred_fallthru
    _
  // Predicated region
  $region6: #{tpu_custom_call.1} parent=0 // pred_check
    _
  $region7: #{tpu_custom_call.1} parent=0 // pred_check_branch
    %15 = sbr.rel (0) target = $region9
  $region8: #{tpu_custom_call.1} parent=0 // pred_region
    _
  $region9: #{tpu_custom_call.1} parent=0 // pred_fallthru
    _
  // Predicated region
  $region10: #{tpu_custom_call.1} parent=0 // pred_check
    _
  $region11: #{tpu_custom_call.1} parent=0 // pred_check_branch
    %17 = sbr.rel (0) target = $region13
  $region12: #{tpu_custom_call.1} parent=0 // pred_region
    _
  $region13: #{tpu_custom_call.1} parent=0 // pred_fallthru
    _
  // Predicated region
  $region14: #{tpu_custom_call.1} parent=0 // pred_check
    _
  $region15: #{tpu_custom_call.1} parent=0 // pred_check_branch
    %19 = sbr.rel (0) target = $region17
  $region16: #{tpu_custom_call.1} parent=0 // pred_region
    _
  $region17: #{tpu_custom_call.1} parent=0 // pred_fallthru
    _
  // Predicated region
  $region18: #{tpu_custom_call.1} parent=0 // pred_check
    _
  $region19: #{tpu_custom_call.1} parent=0 // pred_check_branch
    %21 = sbr.rel (0) target = $region21
  $region20: #{tpu_custom_call.1} parent=0 // pred_region
    _
  $region21: #{tpu_custom_call.1} parent=0 // pred_fallthru
    _
  // Predicated region
  $region22: #{tpu_custom_call.1} parent=0 // pred_check
    _
  $region23: #{tpu_custom_call.1} parent=0 // pred_check_branch
    %23 = sbr.rel (0) target = $region25
  $region24: #{tpu_custom_call.1} parent=0 // pred_region
    _
  $region25: #{tpu_custom_call.1} parent=0 // pred_fallthru
    _
  // Predicated region
  $region26: #{tpu_custom_call.1} parent=0 // pred_check
    _
  $region27: #{tpu_custom_call.1} parent=0 // pred_check_branch
    %25 = sbr.rel (0) target = $region29
  $region28: #{tpu_custom_call.1} parent=0 // pred_region
    _
  $region29: #{tpu_custom_call.1} parent=0 // pred_fallthru
    _
  %v26 = vld [vmem:[%s0] sm:$0xff]
  %v27 = vld [vmem:[%s2] sm:$0x1]
  %v28 = vld [vmem:[%s1] sm:$0x1]
  %30 = vset.pattern.permute.xlu0 0
  %31 = vperm.xlu0 %30, %v26
  %v32 = vpop.permute.xlu0 %31
  %v34 = vlaneseq
  %v35 = vshrl.u32 %v34, 7
  %v36 = vsub.s32 0, %v35
  %v37 = vrot.slane %v28, %v36
  %v38 = vmul.f32 %v32, %v37
  %v40 = vlaneseq
  %v41 = vshrl.u32 %v40, 7
  %v42 = vsub.s32 0, %v41
  %v43 = vrot.slane %v27, %v42
  %v45 = vadd.f32 %v43, %v38
  %v46 = vld [vmem:[%s1 + $0x1] sm:$0x1]
  %47 = vset.pattern.permute.xlu0 1
  %48 = vperm.xlu0 %47, %v26
  %v49 = vpop.permute.xlu0 %48
  %v51 = vlaneseq
  %v52 = vshrl.u32 %v51, 7
  %v53 = vsub.s32 0, %v52
  %v54 = vrot.slane %v46, %v53
  %v55 = vmul.f32 %v49, %v54
  %v56 = vadd.f32 %v45, %v55
  %v57 = vld [vmem:[%s1 + $0x2] sm:$0x1]
  %58 = vset.pattern.permute.xlu0 2
  %59 = vperm.xlu0 %58, %v26
  %v60 = vpop.permute.xlu0 %59
  %v62 = vlaneseq
  %v63 = vshrl.u32 %v62, 7
  %v64 = vsub.s32 0, %v63
  %v65 = vrot.slane %v57, %v64
  %v66 = vmul.f32 %v60, %v65
  %v67 = vadd.f32 %v56, %v66
  %v68 = vld [vmem:[%s1 + $0x3] sm:$0x1]
  %69 = vset.pattern.permute.xlu0 3
  %70 = vperm.xlu0 %69, %v26
  %v71 = vpop.permute.xlu0 %70
  %v73 = vlaneseq
  %v74 = vshrl.u32 %v73, 7
  %v75 = vsub.s32 0, %v74
  %v76 = vrot.slane %v68, %v75
  %v77 = vmul.f32 %v71, %v76
  %v78 = vadd.f32 %v67, %v77
  %v79 = vtanh.pop %v78
  %v80 = vld [vmem:[%s3] sm:$0xff]
  %v81 = vld [vmem:[%s3 + $0x8] sm:$0xff]
  %v82 = vld [vmem:[%s3 + $0x10] sm:$0xff]
  %v83 = vld [vmem:[%s3 + $0x18] sm:$0xff]
  %v84 = vld [vmem:[%s4] sm:$0x1]
  %v86 = vlaneseq
  %v87 = vshrl.u32 %v86, 7
  %v88 = vsub.s32 0, %v87
  %v89 = vrot.slane %v84, %v88
  %vm91 = vcmask 261120
  %v93 = vsel %vm91, %v79, 0
  %95 = vmatprep.subr.mxu0 0.0
  %96 = vmatpush1.msra.mxu0 0.0
  %97 = vmatprep.subr.mxu0 0.0
  %98 = vmatpush1.msra.mxu0 0.0
  %99 = vmatprep.subr.mxu0 0.0
  %100 = vmatpush1.msra.mxu0 0.0
  %101 = vmatprep.subr.mxu0 0.0
  %102 = vmatpush1.msra.mxu0 0.0
  %103 = vmatprep.subr.mxu0 0.0
  %104 = vmatpush1.msra.mxu0 0.0
  %105 = vmatprep.subr.mxu0 0.0
  %106 = vmatpush1.msra.mxu0 0.0
  %107 = vmatprep.subr.mxu0 0.0
  %108 = vmatpush1.msra.mxu0 0.0
  %109 = vmatprep.subr.mxu0 0.0
  %110 = vmatpush1.msra.mxu0 0.0
  %111 = vmatprep.subr.mxu0 0.0
  %112 = vmatpush1.msra.mxu0 0.0
  %113 = vmatprep.subr.mxu0 0.0
  %114 = vmatpush1.msra.mxu0 0.0
  %115 = vmatprep.subr.mxu0 0.0
  %116 = vmatpush1.msra.mxu0 0.0
  %117 = vmatprep.subr.mxu0 0.0
  %118 = vmatpush1.msra.mxu0 0.0
  %119 = vmatprep.subr.mxu0 0.0
  %v120 = vand.u32 %v83, 4294901760
  %121 = vmatpush1.msra.mxu0 %v120
  %122 = vmatprep.subr.mxu0 0.0
  %v123 = vand.u32 %v82, 4294901760
  %124 = vmatpush1.msra.mxu0 %v123
  %125 = vmatprep.subr.mxu0 0.0
  %v126 = vand.u32 %v81, 4294901760
  %127 = vmatpush1.msra.mxu0 %v126
  %128 = vmatprep.subr.mxu0 0.0
  %v129 = vand.u32 %v80, 4294901760
  %130 = vmatpush1.msra.mxu0 %v129
  %131 = vmatprep.subr.mxu0 0.0
  %132 = vmatpush2.msra.mxu0 0.0
  %133 = vmatprep.subr.mxu0 0.0
  %134 = vmatpush2.msra.mxu0 0.0
  %135 = vmatprep.subr.mxu0 0.0
  %136 = vmatpush2.msra.mxu0 0.0
  %137 = vmatprep.subr.mxu0 0.0
  %138 = vmatpush2.msra.mxu0 0.0
  %139 = vmatprep.subr.mxu0 0.0
  %140 = vmatpush2.msra.mxu0 0.0
  %141 = vmatprep.subr.mxu0 0.0
  %142 = vmatpush2.msra.mxu0 0.0
  %143 = vmatprep.subr.mxu0 0.0
  %144 = vmatpush2.msra.mxu0 0.0
  %145 = vmatprep.subr.mxu0 0.0
  %146 = vmatpush2.msra.mxu0 0.0
  %147 = vmatprep.subr.mxu0 0.0
  %148 = vmatpush2.msra.mxu0 0.0
  %149 = vmatprep.subr.mxu0 0.0
  %150 = vmatpush2.msra.mxu0 0.0
  %151 = vmatprep.subr.mxu0 0.0
  %152 = vmatpush2.msra.mxu0 0.0
  %153 = vmatprep.subr.mxu0 0.0
  %154 = vmatpush2.msra.mxu0 0.0
  %155 = vmatprep.subr.mxu0 0.0
  %156 = vmatpush2.msra.mxu0 0.0
  %157 = vmatprep.subr.mxu0 0.0
  %158 = vmatpush2.msra.mxu0 0.0
  %159 = vmatprep.subr.mxu0 0.0
  %160 = vmatpush2.msra.mxu0 0.0
  %161 = vmatprep.subr.mxu0 0.0
  %162 = vmatpush2.msra.mxu0 0.0
  %163 = vmatprep.mubr.f32.mxu0 0.0
  %v164 = vand.u32 %v93, 4294901760
  %v165 = vsub.f32 %v93, %v164
  %v166 = vand.u32 %v165, 4294901760
  %v167 = vsub.f32 %v165, %v166
  %v168 = vand.u32 %v167, 4294901760
  %169 = vmatmul.mubr.f32.gmra.mxu0 %v168
  %v170 = vpop.f32.mrf.mxu0
  %v171 = vadd.f32 %v89, %v170
  %v172 = vpop.f32.mrf.mxu0
  %173 = vdwg.mxu0
  %174 = vmatprep.subr.mxu0 0.0
  %175 = vmatpush1.msra.mxu0 0.0
  %176 = vmatprep.subr.mxu0 0.0
  %177 = vmatpush1.msra.mxu0 0.0
  %178 = vmatprep.subr.mxu0 0.0
  %179 = vmatpush1.msra.mxu0 0.0
  %180 = vmatprep.subr.mxu0 0.0
  %181 = vmatpush1.msra.mxu0 0.0
  %182 = vmatprep.subr.mxu0 0.0
  %183 = vmatpush1.msra.mxu0 0.0
  %184 = vmatprep.subr.mxu0 0.0
  %185 = vmatpush1.msra.mxu0 0.0
  %186 = vmatprep.subr.mxu0 0.0
  %187 = vmatpush1.msra.mxu0 0.0
  %188 = vmatprep.subr.mxu0 0.0
  %189 = vmatpush1.msra.mxu0 0.0
  %190 = vmatprep.subr.mxu0 0.0
  %191 = vmatpush1.msra.mxu0 0.0
  %192 = vmatprep.subr.mxu0 0.0
  %193 = vmatpush1.msra.mxu0 0.0
  %194 = vmatprep.subr.mxu0 0.0
  %195 = vmatpush1.msra.mxu0 0.0
  %196 = vmatprep.subr.mxu0 0.0
  %197 = vmatpush1.msra.mxu0 0.0
  %198 = vmatprep.subr.mxu0 0.0
  %v199 = vand.u32 %v83, 4294901760
  %v200 = vsub.f32 %v83, %v199
  %v201 = vand.u32 %v200, 4294901760
  %v202 = vsub.f32 %v200, %v201
  %v203 = vand.u32 %v202, 4294901760
  %204 = vmatpush1.msra.mxu0 %v203
  %205 = vmatprep.subr.mxu0 0.0
  %v206 = vand.u32 %v82, 4294901760
  %v207 = vsub.f32 %v82, %v206
  %v208 = vand.u32 %v207, 4294901760
  %v209 = vsub.f32 %v207, %v208
  %v210 = vand.u32 %v209, 4294901760
  %211 = vmatpush1.msra.mxu0 %v210
  %212 = vmatprep.subr.mxu0 0.0
  %v213 = vand.u32 %v81, 4294901760
  %v214 = vsub.f32 %v81, %v213
  %v215 = vand.u32 %v214, 4294901760
  %v216 = vsub.f32 %v214, %v215
  %v217 = vand.u32 %v216, 4294901760
  %218 = vmatpush1.msra.mxu0 %v217
  %219 = vmatprep.subr.mxu0 0.0
  %v220 = vand.u32 %v80, 4294901760
  %v221 = vsub.f32 %v80, %v220
  %v222 = vand.u32 %v221, 4294901760
  %v223 = vsub.f32 %v221, %v222
  %v224 = vand.u32 %v223, 4294901760
  %225 = vmatpush1.msra.mxu0 %v224
  %226 = vmatprep.subr.mxu0 0.0
  %227 = vmatpush2.msra.mxu0 0.0
  %228 = vmatprep.subr.mxu0 0.0
  %229 = vmatpush2.msra.mxu0 0.0
  %230 = vmatprep.subr.mxu0 0.0
  %231 = vmatpush2.msra.mxu0 0.0
  %232 = vmatprep.subr.mxu0 0.0
  %233 = vmatpush2.msra.mxu0 0.0
  %234 = vmatprep.subr.mxu0 0.0
  %235 = vmatpush2.msra.mxu0 0.0
  %236 = vmatprep.subr.mxu0 0.0
  %237 = vmatpush2.msra.mxu0 0.0
  %238 = vmatprep.subr.mxu0 0.0
  %239 = vmatpush2.msra.mxu0 0.0
  %240 = vmatprep.subr.mxu0 0.0
  %241 = vmatpush2.msra.mxu0 0.0
  %242 = vmatprep.subr.mxu0 0.0
  %243 = vmatpush2.msra.mxu0 0.0
  %244 = vmatprep.subr.mxu0 0.0
  %245 = vmatpush2.msra.mxu0 0.0
  %246 = vmatprep.subr.mxu0 0.0
  %247 = vmatpush2.msra.mxu0 0.0
  %248 = vmatprep.subr.mxu0 0.0
  %249 = vmatpush2.msra.mxu0 0.0
  %250 = vmatprep.subr.mxu0 0.0
  %251 = vmatpush2.msra.mxu0 0.0
  %252 = vmatprep.subr.mxu0 0.0
  %253 = vmatpush2.msra.mxu0 0.0
  %254 = vmatprep.subr.mxu0 0.0
  %255 = vmatpush2.msra.mxu0 0.0
  %256 = vmatprep.subr.mxu0 0.0
  %257 = vmatpush2.msra.mxu0 0.0
  %258 = vmatprep.mubr.f32.mxu0 0.0
  %v259 = vand.u32 %v93, 4294901760
  %260 = vmatmul.mubr.f32.gmra.mxu0 %v259
  %v261 = vpop.f32.mrf.mxu0
  %v262 = vadd.f32 %v171, %v261
  %v263 = vpop.f32.mrf.mxu0
  %264 = vdwg.mxu0
  %265 = vmatprep.subr.mxu0 0.0
  %266 = vmatpush1.msra.mxu0 0.0
  %267 = vmatprep.subr.mxu0 0.0
  %268 = vmatpush1.msra.mxu0 0.0
  %269 = vmatprep.subr.mxu0 0.0
  %270 = vmatpush1.msra.mxu0 0.0
  %271 = vmatprep.subr.mxu0 0.0
  %272 = vmatpush1.msra.mxu0 0.0
  %273 = vmatprep.subr.mxu0 0.0
  %274 = vmatpush1.msra.mxu0 0.0
  %275 = vmatprep.subr.mxu0 0.0
  %276 = vmatpush1.msra.mxu0 0.0
  %277 = vmatprep.subr.mxu0 0.0
  %278 = vmatpush1.msra.mxu0 0.0
  %279 = vmatprep.subr.mxu0 0.0
  %280 = vmatpush1.msra.mxu0 0.0
  %281 = vmatprep.subr.mxu0 0.0
  %282 = vmatpush1.msra.mxu0 0.0
  %283 = vmatprep.subr.mxu0 0.0
  %284 = vmatpush1.msra.mxu0 0.0
  %285 = vmatprep.subr.mxu0 0.0
  %286 = vmatpush1.msra.mxu0 0.0
  %287 = vmatprep.subr.mxu0 0.0
  %288 = vmatpush1.msra.mxu0 0.0
  %289 = vmatprep.subr.mxu0 0.0
  %v290 = vand.u32 %v83, 4294901760
  %v291 = vsub.f32 %v83, %v290
  %292 = vmatpush1.msra.mxu0 %v291
  %293 = vmatprep.subr.mxu0 0.0
  %v294 = vand.u32 %v82, 4294901760
  %v295 = vsub.f32 %v82, %v294
  %296 = vmatpush1.msra.mxu0 %v295
  %297 = vmatprep.subr.mxu0 0.0
  %v298 = vand.u32 %v81, 4294901760
  %v299 = vsub.f32 %v81, %v298
  %300 = vmatpush1.msra.mxu0 %v299
  %301 = vmatprep.subr.mxu0 0.0
  %v302 = vand.u32 %v80, 4294901760
  %v303 = vsub.f32 %v80, %v302
  %304 = vmatpush1.msra.mxu0 %v303
  %305 = vmatprep.subr.mxu0 0.0
  %306 = vmatpush2.msra.mxu0 0.0
  %307 = vmatprep.subr.mxu0 0.0
  %308 = vmatpush2.msra.mxu0 0.0
  %309 = vmatprep.subr.mxu0 0.0
  %310 = vmatpush2.msra.mxu0 0.0
  %311 = vmatprep.subr.mxu0 0.0
  %312 = vmatpush2.msra.mxu0 0.0
  %313 = vmatprep.subr.mxu0 0.0
  %314 = vmatpush2.msra.mxu0 0.0
  %315 = vmatprep.subr.mxu0 0.0
  %316 = vmatpush2.msra.mxu0 0.0
  %317 = vmatprep.subr.mxu0 0.0
  %318 = vmatpush2.msra.mxu0 0.0
  %319 = vmatprep.subr.mxu0 0.0
  %320 = vmatpush2.msra.mxu0 0.0
  %321 = vmatprep.subr.mxu0 0.0
  %322 = vmatpush2.msra.mxu0 0.0
  %323 = vmatprep.subr.mxu0 0.0
  %324 = vmatpush2.msra.mxu0 0.0
  %325 = vmatprep.subr.mxu0 0.0
  %326 = vmatpush2.msra.mxu0 0.0
  %327 = vmatprep.subr.mxu0 0.0
  %328 = vmatpush2.msra.mxu0 0.0
  %329 = vmatprep.subr.mxu0 0.0
  %330 = vmatpush2.msra.mxu0 0.0
  %331 = vmatprep.subr.mxu0 0.0
  %332 = vmatpush2.msra.mxu0 0.0
  %333 = vmatprep.subr.mxu0 0.0
  %334 = vmatpush2.msra.mxu0 0.0
  %335 = vmatprep.subr.mxu0 0.0
  %336 = vmatpush2.msra.mxu0 0.0
  %337 = vmatprep.mubr.f32.mxu0 0.0
  %v338 = vand.u32 %v93, 4294901760
  %v339 = vsub.f32 %v93, %v338
  %340 = vmatmul.mubr.f32.gmra.mxu0 %v339
  %v341 = vpop.f32.mrf.mxu0
  %v342 = vadd.f32 %v262, %v341
  %v343 = vpop.f32.mrf.mxu0
  %344 = vdwg.mxu0
  %345 = vmatprep.subr.mxu0 0.0
  %346 = vmatpush1.msra.mxu0 0.0
  %347 = vmatprep.subr.mxu0 0.0
  %348 = vmatpush1.msra.mxu0 0.0
  %349 = vmatprep.subr.mxu0 0.0
  %350 = vmatpush1.msra.mxu0 0.0
  %351 = vmatprep.subr.mxu0 0.0
  %352 = vmatpush1.msra.mxu0 0.0
  %353 = vmatprep.subr.mxu0 0.0
  %354 = vmatpush1.msra.mxu0 0.0
  %355 = vmatprep.subr.mxu0 0.0
  %356 = vmatpush1.msra.mxu0 0.0
  %357 = vmatprep.subr.mxu0 0.0
  %358 = vmatpush1.msra.mxu0 0.0
  %359 = vmatprep.subr.mxu0 0.0
  %360 = vmatpush1.msra.mxu0 0.0
  %361 = vmatprep.subr.mxu0 0.0
  %362 = vmatpush1.msra.mxu0 0.0
  %363 = vmatprep.subr.mxu0 0.0
  %364 = vmatpush1.msra.mxu0 0.0
  %365 = vmatprep.subr.mxu0 0.0
  %366 = vmatpush1.msra.mxu0 0.0
  %367 = vmatprep.subr.mxu0 0.0
  %368 = vmatpush1.msra.mxu0 0.0
  %369 = vmatprep.subr.mxu0 0.0
  %v370 = vand.u32 %v83, 4294901760
  %371 = vmatpush1.msra.mxu0 %v370
  %372 = vmatprep.subr.mxu0 0.0
  %v373 = vand.u32 %v82, 4294901760
  %374 = vmatpush1.msra.mxu0 %v373
  %375 = vmatprep.subr.mxu0 0.0
  %v376 = vand.u32 %v81, 4294901760
  %377 = vmatpush1.msra.mxu0 %v376
  %378 = vmatprep.subr.mxu0 0.0
  %v379 = vand.u32 %v80, 4294901760
  %380 = vmatpush1.msra.mxu0 %v379
  %381 = vmatprep.subr.mxu0 0.0
  %382 = vmatpush2.msra.mxu0 0.0
  %383 = vmatprep.subr.mxu0 0.0
  %384 = vmatpush2.msra.mxu0 0.0
  %385 = vmatprep.subr.mxu0 0.0
  %386 = vmatpush2.msra.mxu0 0.0
  %387 = vmatprep.subr.mxu0 0.0
  %388 = vmatpush2.msra.mxu0 0.0
  %389 = vmatprep.subr.mxu0 0.0
  %390 = vmatpush2.msra.mxu0 0.0
  %391 = vmatprep.subr.mxu0 0.0
  %392 = vmatpush2.msra.mxu0 0.0
  %393 = vmatprep.subr.mxu0 0.0
  %394 = vmatpush2.msra.mxu0 0.0
  %395 = vmatprep.subr.mxu0 0.0
  %396 = vmatpush2.msra.mxu0 0.0
  %397 = vmatprep.subr.mxu0 0.0
  %398 = vmatpush2.msra.mxu0 0.0
  %399 = vmatprep.subr.mxu0 0.0
  %400 = vmatpush2.msra.mxu0 0.0
  %401 = vmatprep.subr.mxu0 0.0
  %402 = vmatpush2.msra.mxu0 0.0
  %403 = vmatprep.subr.mxu0 0.0
  %404 = vmatpush2.msra.mxu0 0.0
  %405 = vmatprep.subr.mxu0 0.0
  %406 = vmatpush2.msra.mxu0 0.0
  %407 = vmatprep.subr.mxu0 0.0
  %408 = vmatpush2.msra.mxu0 0.0
  %409 = vmatprep.subr.mxu0 0.0
  %410 = vmatpush2.msra.mxu0 0.0
  %411 = vmatprep.subr.mxu0 0.0
  %412 = vmatpush2.msra.mxu0 0.0
  %413 = vmatprep.mubr.f32.mxu0 0.0
  %v414 = vand.u32 %v93, 4294901760
  %v415 = vsub.f32 %v93, %v414
  %v416 = vand.u32 %v415, 4294901760
  %417 = vmatmul.mubr.f32.gmra.mxu0 %v416
  %v418 = vpop.f32.mrf.mxu0
  %v419 = vadd.f32 %v342, %v418
  %v420 = vpop.f32.mrf.mxu0
  %421 = vdwg.mxu0
  %422 = vmatprep.subr.mxu0 0.0
  %423 = vmatpush1.msra.mxu0 0.0
  %424 = vmatprep.subr.mxu0 0.0
  %425 = vmatpush1.msra.mxu0 0.0
  %426 = vmatprep.subr.mxu0 0.0
  %427 = vmatpush1.msra.mxu0 0.0
  %428 = vmatprep.subr.mxu0 0.0
  %429 = vmatpush1.msra.mxu0 0.0
  %430 = vmatprep.subr.mxu0 0.0
  %431 = vmatpush1.msra.mxu0 0.0
  %432 = vmatprep.subr.mxu0 0.0
  %433 = vmatpush1.msra.mxu0 0.0
  %434 = vmatprep.subr.mxu0 0.0
  %435 = vmatpush1.msra.mxu0 0.0
  %436 = vmatprep.subr.mxu0 0.0
  %437 = vmatpush1.msra.mxu0 0.0
  %438 = vmatprep.subr.mxu0 0.0
  %439 = vmatpush1.msra.mxu0 0.0
  %440 = vmatprep.subr.mxu0 0.0
  %441 = vmatpush1.msra.mxu0 0.0
  %442 = vmatprep.subr.mxu0 0.0
  %443 = vmatpush1.msra.mxu0 0.0
  %444 = vmatprep.subr.mxu0 0.0
  %445 = vmatpush1.msra.mxu0 0.0
  %446 = vmatprep.subr.mxu0 0.0
  %v447 = vand.u32 %v83, 4294901760
  %v448 = vsub.f32 %v83, %v447
  %v449 = vand.u32 %v448, 4294901760
  %450 = vmatpush1.msra.mxu0 %v449
  %451 = vmatprep.subr.mxu0 0.0
  %v452 = vand.u32 %v82, 4294901760
  %v453 = vsub.f32 %v82, %v452
  %v454 = vand.u32 %v453, 4294901760
  %455 = vmatpush1.msra.mxu0 %v454
  %456 = vmatprep.subr.mxu0 0.0
  %v457 = vand.u32 %v81, 4294901760
  %v458 = vsub.f32 %v81, %v457
  %v459 = vand.u32 %v458, 4294901760
  %460 = vmatpush1.msra.mxu0 %v459
  %461 = vmatprep.subr.mxu0 0.0
  %v462 = vand.u32 %v80, 4294901760
  %v463 = vsub.f32 %v80, %v462
  %v464 = vand.u32 %v463, 4294901760
  %465 = vmatpush1.msra.mxu0 %v464
  %466 = vmatprep.subr.mxu0 0.0
  %467 = vmatpush2.msra.mxu0 0.0
  %468 = vmatprep.subr.mxu0 0.0
  %469 = vmatpush2.msra.mxu0 0.0
  %470 = vmatprep.subr.mxu0 0.0
  %471 = vmatpush2.msra.mxu0 0.0
  %472 = vmatprep.subr.mxu0 0.0
  %473 = vmatpush2.msra.mxu0 0.0
  %474 = vmatprep.subr.mxu0 0.0
  %475 = vmatpush2.msra.mxu0 0.0
  %476 = vmatprep.subr.mxu0 0.0
  %477 = vmatpush2.msra.mxu0 0.0
  %478 = vmatprep.subr.mxu0 0.0
  %479 = vmatpush2.msra.mxu0 0.0
  %480 = vmatprep.subr.mxu0 0.0
  %481 = vmatpush2.msra.mxu0 0.0
  %482 = vmatprep.subr.mxu0 0.0
  %483 = vmatpush2.msra.mxu0 0.0
  %484 = vmatprep.subr.mxu0 0.0
  %485 = vmatpush2.msra.mxu0 0.0
  %486 = vmatprep.subr.mxu0 0.0
  %487 = vmatpush2.msra.mxu0 0.0
  %488 = vmatprep.subr.mxu0 0.0
  %489 = vmatpush2.msra.mxu0 0.0
  %490 = vmatprep.subr.mxu0 0.0
  %491 = vmatpush2.msra.mxu0 0.0
  %492 = vmatprep.subr.mxu0 0.0
  %493 = vmatpush2.msra.mxu0 0.0
  %494 = vmatprep.subr.mxu0 0.0
  %495 = vmatpush2.msra.mxu0 0.0
  %496 = vmatprep.subr.mxu0 0.0
  %497 = vmatpush2.msra.mxu0 0.0
  %498 = vmatprep.mubr.f32.mxu0 0.0
  %v499 = vand.u32 %v93, 4294901760
  %500 = vmatmul.mubr.f32.gmra.mxu0 %v499
  %v501 = vpop.f32.mrf.mxu0
  %v502 = vadd.f32 %v419, %v501
  %v503 = vpop.f32.mrf.mxu0
  %504 = vdwg.mxu0
  %505 = vmatprep.subr.mxu0 0.0
  %506 = vmatpush1.msra.mxu0 0.0
  %507 = vmatprep.subr.mxu0 0.0
  %508 = vmatpush1.msra.mxu0 0.0
  %509 = vmatprep.subr.mxu0 0.0
  %510 = vmatpush1.msra.mxu0 0.0
  %511 = vmatprep.subr.mxu0 0.0
  %512 = vmatpush1.msra.mxu0 0.0
  %513 = vmatprep.subr.mxu0 0.0
  %514 = vmatpush1.msra.mxu0 0.0
  %515 = vmatprep.subr.mxu0 0.0
  %516 = vmatpush1.msra.mxu0 0.0
  %517 = vmatprep.subr.mxu0 0.0
  %518 = vmatpush1.msra.mxu0 0.0
  %519 = vmatprep.subr.mxu0 0.0
  %520 = vmatpush1.msra.mxu0 0.0
  %521 = vmatprep.subr.mxu0 0.0
  %522 = vmatpush1.msra.mxu0 0.0
  %523 = vmatprep.subr.mxu0 0.0
  %524 = vmatpush1.msra.mxu0 0.0
  %525 = vmatprep.subr.mxu0 0.0
  %526 = vmatpush1.msra.mxu0 0.0
  %527 = vmatprep.subr.mxu0 0.0
  %528 = vmatpush1.msra.mxu0 0.0
  %529 = vmatprep.subr.mxu0 0.0
  %v530 = vand.u32 %v83, 4294901760
  %531 = vmatpush1.msra.mxu0 %v530
  %532 = vmatprep.subr.mxu0 0.0
  %v533 = vand.u32 %v82, 4294901760
  %534 = vmatpush1.msra.mxu0 %v533
  %535 = vmatprep.subr.mxu0 0.0
  %v536 = vand.u32 %v81, 4294901760
  %537 = vmatpush1.msra.mxu0 %v536
  %538 = vmatprep.subr.mxu0 0.0
  %v539 = vand.u32 %v80, 4294901760
  %540 = vmatpush1.msra.mxu0 %v539
  %541 = vmatprep.subr.mxu0 0.0
  %542 = vmatpush2.msra.mxu0 0.0
  %543 = vmatprep.subr.mxu0 0.0
  %544 = vmatpush2.msra.mxu0 0.0
  %545 = vmatprep.subr.mxu0 0.0
  %546 = vmatpush2.msra.mxu0 0.0
  %547 = vmatprep.subr.mxu0 0.0
  %548 = vmatpush2.msra.mxu0 0.0
  %549 = vmatprep.subr.mxu0 0.0
  %550 = vmatpush2.msra.mxu0 0.0
  %551 = vmatprep.subr.mxu0 0.0
  %552 = vmatpush2.msra.mxu0 0.0
  %553 = vmatprep.subr.mxu0 0.0
  %554 = vmatpush2.msra.mxu0 0.0
  %555 = vmatprep.subr.mxu0 0.0
  %556 = vmatpush2.msra.mxu0 0.0
  %557 = vmatprep.subr.mxu0 0.0
  %558 = vmatpush2.msra.mxu0 0.0
  %559 = vmatprep.subr.mxu0 0.0
  %560 = vmatpush2.msra.mxu0 0.0
  %561 = vmatprep.subr.mxu0 0.0
  %562 = vmatpush2.msra.mxu0 0.0
  %563 = vmatprep.subr.mxu0 0.0
  %564 = vmatpush2.msra.mxu0 0.0
  %565 = vmatprep.subr.mxu0 0.0
  %566 = vmatpush2.msra.mxu0 0.0
  %567 = vmatprep.subr.mxu0 0.0
  %568 = vmatpush2.msra.mxu0 0.0
  %569 = vmatprep.subr.mxu0 0.0
  %570 = vmatpush2.msra.mxu0 0.0
  %571 = vmatprep.subr.mxu0 0.0
  %572 = vmatpush2.msra.mxu0 0.0
  %573 = vmatprep.mubr.f32.mxu0 0.0
  %v574 = vand.u32 %v93, 4294901760
  %575 = vmatmul.mubr.f32.gmra.mxu0 %v574
  %v576 = vpop.f32.mrf.mxu0
  %v577 = vadd.f32 %v502, %v576
  %v578 = vpop.f32.mrf.mxu0
  %579 = vdwg.mxu0
  %v580 = vtanh.pop %v577
  %v581 = vld [vmem:[%s5] sm:$0xff]
  %v582 = vld [vmem:[%s5 + $0x8] sm:$0xff]
  %v583 = vld [vmem:[%s5 + $0x10] sm:$0xff]
  %v584 = vld [vmem:[%s5 + $0x18] sm:$0xff]
  %v585 = vld [vmem:[%s6] sm:$0x1]
  %v587 = vlaneseq
  %v588 = vshrl.u32 %v587, 7
  %v589 = vsub.s32 0, %v588
  %v590 = vrot.slane %v585, %v589
  %v593 = vsel %vm91, %v580, 0
  %595 = vmatprep.subr.mxu0 0.0
  %596 = vmatpush1.msra.mxu0 0.0
  %597 = vmatprep.subr.mxu0 0.0
  %598 = vmatpush1.msra.mxu0 0.0
  %599 = vmatprep.subr.mxu0 0.0
  %600 = vmatpush1.msra.mxu0 0.0
  %601 = vmatprep.subr.mxu0 0.0
  %602 = vmatpush1.msra.mxu0 0.0
  %603 = vmatprep.subr.mxu0 0.0
  %604 = vmatpush1.msra.mxu0 0.0
  %605 = vmatprep.subr.mxu0 0.0
  %606 = vmatpush1.msra.mxu0 0.0
  %607 = vmatprep.subr.mxu0 0.0
  %608 = vmatpush1.msra.mxu0 0.0
  %609 = vmatprep.subr.mxu0 0.0
  %610 = vmatpush1.msra.mxu0 0.0
  %611 = vmatprep.subr.mxu0 0.0
  %612 = vmatpush1.msra.mxu0 0.0
  %613 = vmatprep.subr.mxu0 0.0
  %614 = vmatpush1.msra.mxu0 0.0
  %615 = vmatprep.subr.mxu0 0.0
  %616 = vmatpush1.msra.mxu0 0.0
  %617 = vmatprep.subr.mxu0 0.0
  %618 = vmatpush1.msra.mxu0 0.0
  %619 = vmatprep.subr.mxu0 0.0
  %v620 = vand.u32 %v584, 4294901760
  %621 = vmatpush1.msra.mxu0 %v620
  %622 = vmatprep.subr.mxu0 0.0
  %v623 = vand.u32 %v583, 4294901760
  %624 = vmatpush1.msra.mxu0 %v623
  %625 = vmatprep.subr.mxu0 0.0
  %v626 = vand.u32 %v582, 4294901760
  %627 = vmatpush1.msra.mxu0 %v626
  %628 = vmatprep.subr.mxu0 0.0
  %v629 = vand.u32 %v581, 4294901760
  %630 = vmatpush1.msra.mxu0 %v629
  %631 = vmatprep.subr.mxu0 0.0
  %632 = vmatpush2.msra.mxu0 0.0
  %633 = vmatprep.subr.mxu0 0.0
  %634 = vmatpush2.msra.mxu0 0.0
  %635 = vmatprep.subr.mxu0 0.0
  %636 = vmatpush2.msra.mxu0 0.0
  %637 = vmatprep.subr.mxu0 0.0
  %638 = vmatpush2.msra.mxu0 0.0
  %639 = vmatprep.subr.mxu0 0.0
  %640 = vmatpush2.msra.mxu0 0.0
  %641 = vmatprep.subr.mxu0 0.0
  %642 = vmatpush2.msra.mxu0 0.0
  %643 = vmatprep.subr.mxu0 0.0
  %644 = vmatpush2.msra.mxu0 0.0
  %645 = vmatprep.subr.mxu0 0.0
  %646 = vmatpush2.msra.mxu0 0.0
  %647 = vmatprep.subr.mxu0 0.0
  %648 = vmatpush2.msra.mxu0 0.0
  %649 = vmatprep.subr.mxu0 0.0
  %650 = vmatpush2.msra.mxu0 0.0
  %651 = vmatprep.subr.mxu0 0.0
  %652 = vmatpush2.msra.mxu0 0.0
  %653 = vmatprep.subr.mxu0 0.0
  %654 = vmatpush2.msra.mxu0 0.0
  %655 = vmatprep.subr.mxu0 0.0
  %656 = vmatpush2.msra.mxu0 0.0
  %657 = vmatprep.subr.mxu0 0.0
  %658 = vmatpush2.msra.mxu0 0.0
  %659 = vmatprep.subr.mxu0 0.0
  %660 = vmatpush2.msra.mxu0 0.0
  %661 = vmatprep.subr.mxu0 0.0
  %662 = vmatpush2.msra.mxu0 0.0
  %663 = vmatprep.mubr.f32.mxu0 0.0
  %v664 = vand.u32 %v593, 4294901760
  %v665 = vsub.f32 %v593, %v664
  %v666 = vand.u32 %v665, 4294901760
  %v667 = vsub.f32 %v665, %v666
  %v668 = vand.u32 %v667, 4294901760
  %669 = vmatmul.mubr.f32.gmra.mxu0 %v668
  %v670 = vpop.f32.mrf.mxu0
  %v671 = vadd.f32 %v590, %v670
  %v672 = vpop.f32.mrf.mxu0
  %673 = vdwg.mxu0
  %674 = vmatprep.subr.mxu0 0.0
  %675 = vmatpush1.msra.mxu0 0.0
  %676 = vmatprep.subr.mxu0 0.0
  %677 = vmatpush1.msra.mxu0 0.0
  %678 = vmatprep.subr.mxu0 0.0
  %679 = vmatpush1.msra.mxu0 0.0
  %680 = vmatprep.subr.mxu0 0.0
  %681 = vmatpush1.msra.mxu0 0.0
  %682 = vmatprep.subr.mxu0 0.0
  %683 = vmatpush1.msra.mxu0 0.0
  %684 = vmatprep.subr.mxu0 0.0
  %685 = vmatpush1.msra.mxu0 0.0
  %686 = vmatprep.subr.mxu0 0.0
  %687 = vmatpush1.msra.mxu0 0.0
  %688 = vmatprep.subr.mxu0 0.0
  %689 = vmatpush1.msra.mxu0 0.0
  %690 = vmatprep.subr.mxu0 0.0
  %691 = vmatpush1.msra.mxu0 0.0
  %692 = vmatprep.subr.mxu0 0.0
  %693 = vmatpush1.msra.mxu0 0.0
  %694 = vmatprep.subr.mxu0 0.0
  %695 = vmatpush1.msra.mxu0 0.0
  %696 = vmatprep.subr.mxu0 0.0
  %697 = vmatpush1.msra.mxu0 0.0
  %698 = vmatprep.subr.mxu0 0.0
  %v699 = vand.u32 %v584, 4294901760
  %v700 = vsub.f32 %v584, %v699
  %v701 = vand.u32 %v700, 4294901760
  %v702 = vsub.f32 %v700, %v701
  %v703 = vand.u32 %v702, 4294901760
  %704 = vmatpush1.msra.mxu0 %v703
  %705 = vmatprep.subr.mxu0 0.0
  %v706 = vand.u32 %v583, 4294901760
  %v707 = vsub.f32 %v583, %v706
  %v708 = vand.u32 %v707, 4294901760
  %v709 = vsub.f32 %v707, %v708
  %v710 = vand.u32 %v709, 4294901760
  %711 = vmatpush1.msra.mxu0 %v710
  %712 = vmatprep.subr.mxu0 0.0
  %v713 = vand.u32 %v582, 4294901760
  %v714 = vsub.f32 %v582, %v713
  %v715 = vand.u32 %v714, 4294901760
  %v716 = vsub.f32 %v714, %v715
  %v717 = vand.u32 %v716, 4294901760
  %718 = vmatpush1.msra.mxu0 %v717
  %719 = vmatprep.subr.mxu0 0.0
  %v720 = vand.u32 %v581, 4294901760
  %v721 = vsub.f32 %v581, %v720
  %v722 = vand.u32 %v721, 4294901760
  %v723 = vsub.f32 %v721, %v722
  %v724 = vand.u32 %v723, 4294901760
  %725 = vmatpush1.msra.mxu0 %v724
  %726 = vmatprep.subr.mxu0 0.0
  %727 = vmatpush2.msra.mxu0 0.0
  %728 = vmatprep.subr.mxu0 0.0
  %729 = vmatpush2.msra.mxu0 0.0
  %730 = vmatprep.subr.mxu0 0.0
  %731 = vmatpush2.msra.mxu0 0.0
  %732 = vmatprep.subr.mxu0 0.0
  %733 = vmatpush2.msra.mxu0 0.0
  %734 = vmatprep.subr.mxu0 0.0
  %735 = vmatpush2.msra.mxu0 0.0
  %736 = vmatprep.subr.mxu0 0.0
  %737 = vmatpush2.msra.mxu0 0.0
  %738 = vmatprep.subr.mxu0 0.0
  %739 = vmatpush2.msra.mxu0 0.0
  %740 = vmatprep.subr.mxu0 0.0
  %741 = vmatpush2.msra.mxu0 0.0
  %742 = vmatprep.subr.mxu0 0.0
  %743 = vmatpush2.msra.mxu0 0.0
  %744 = vmatprep.subr.mxu0 0.0
  %745 = vmatpush2.msra.mxu0 0.0
  %746 = vmatprep.subr.mxu0 0.0
  %747 = vmatpush2.msra.mxu0 0.0
  %748 = vmatprep.subr.mxu0 0.0
  %749 = vmatpush2.msra.mxu0 0.0
  %750 = vmatprep.subr.mxu0 0.0
  %751 = vmatpush2.msra.mxu0 0.0
  %752 = vmatprep.subr.mxu0 0.0
  %753 = vmatpush2.msra.mxu0 0.0
  %754 = vmatprep.subr.mxu0 0.0
  %755 = vmatpush2.msra.mxu0 0.0
  %756 = vmatprep.subr.mxu0 0.0
  %757 = vmatpush2.msra.mxu0 0.0
  %758 = vmatprep.mubr.f32.mxu0 0.0
  %v759 = vand.u32 %v593, 4294901760
  %760 = vmatmul.mubr.f32.gmra.mxu0 %v759
  %v761 = vpop.f32.mrf.mxu0
  %v762 = vadd.f32 %v671, %v761
  %v763 = vpop.f32.mrf.mxu0
  %764 = vdwg.mxu0
  %765 = vmatprep.subr.mxu0 0.0
  %766 = vmatpush1.msra.mxu0 0.0
  %767 = vmatprep.subr.mxu0 0.0
  %768 = vmatpush1.msra.mxu0 0.0
  %769 = vmatprep.subr.mxu0 0.0
  %770 = vmatpush1.msra.mxu0 0.0
  %771 = vmatprep.subr.mxu0 0.0
  %772 = vmatpush1.msra.mxu0 0.0
  %773 = vmatprep.subr.mxu0 0.0
  %774 = vmatpush1.msra.mxu0 0.0
  %775 = vmatprep.subr.mxu0 0.0
  %776 = vmatpush1.msra.mxu0 0.0
  %777 = vmatprep.subr.mxu0 0.0
  %778 = vmatpush1.msra.mxu0 0.0
  %779 = vmatprep.subr.mxu0 0.0
  %780 = vmatpush1.msra.mxu0 0.0
  %781 = vmatprep.subr.mxu0 0.0
  %782 = vmatpush1.msra.mxu0 0.0
  %783 = vmatprep.subr.mxu0 0.0
  %784 = vmatpush1.msra.mxu0 0.0
  %785 = vmatprep.subr.mxu0 0.0
  %786 = vmatpush1.msra.mxu0 0.0
  %787 = vmatprep.subr.mxu0 0.0
  %788 = vmatpush1.msra.mxu0 0.0
  %789 = vmatprep.subr.mxu0 0.0
  %v790 = vand.u32 %v584, 4294901760
  %v791 = vsub.f32 %v584, %v790
  %792 = vmatpush1.msra.mxu0 %v791
  %793 = vmatprep.subr.mxu0 0.0
  %v794 = vand.u32 %v583, 4294901760
  %v795 = vsub.f32 %v583, %v794
  %796 = vmatpush1.msra.mxu0 %v795
  %797 = vmatprep.subr.mxu0 0.0
  %v798 = vand.u32 %v582, 4294901760
  %v799 = vsub.f32 %v582, %v798
  %800 = vmatpush1.msra.mxu0 %v799
  %801 = vmatprep.subr.mxu0 0.0
  %v802 = vand.u32 %v581, 4294901760
  %v803 = vsub.f32 %v581, %v802
  %804 = vmatpush1.msra.mxu0 %v803
  %805 = vmatprep.subr.mxu0 0.0
  %806 = vmatpush2.msra.mxu0 0.0
  %807 = vmatprep.subr.mxu0 0.0
  %808 = vmatpush2.msra.mxu0 0.0
  %809 = vmatprep.subr.mxu0 0.0
  %810 = vmatpush2.msra.mxu0 0.0
  %811 = vmatprep.subr.mxu0 0.0
  %812 = vmatpush2.msra.mxu0 0.0
  %813 = vmatprep.subr.mxu0 0.0
  %814 = vmatpush2.msra.mxu0 0.0
  %815 = vmatprep.subr.mxu0 0.0
  %816 = vmatpush2.msra.mxu0 0.0
  %817 = vmatprep.subr.mxu0 0.0
  %818 = vmatpush2.msra.mxu0 0.0
  %819 = vmatprep.subr.mxu0 0.0
  %820 = vmatpush2.msra.mxu0 0.0
  %821 = vmatprep.subr.mxu0 0.0
  %822 = vmatpush2.msra.mxu0 0.0
  %823 = vmatprep.subr.mxu0 0.0
  %824 = vmatpush2.msra.mxu0 0.0
  %825 = vmatprep.subr.mxu0 0.0
  %826 = vmatpush2.msra.mxu0 0.0
  %827 = vmatprep.subr.mxu0 0.0
  %828 = vmatpush2.msra.mxu0 0.0
  %829 = vmatprep.subr.mxu0 0.0
  %830 = vmatpush2.msra.mxu0 0.0
  %831 = vmatprep.subr.mxu0 0.0
  %832 = vmatpush2.msra.mxu0 0.0
  %833 = vmatprep.subr.mxu0 0.0
  %834 = vmatpush2.msra.mxu0 0.0
  %835 = vmatprep.subr.mxu0 0.0
  %836 = vmatpush2.msra.mxu0 0.0
  %837 = vmatprep.mubr.f32.mxu0 0.0
  %v838 = vand.u32 %v593, 4294901760
  %v839 = vsub.f32 %v593, %v838
  %840 = vmatmul.mubr.f32.gmra.mxu0 %v839
  %v841 = vpop.f32.mrf.mxu0
  %v842 = vadd.f32 %v762, %v841
  %v843 = vpop.f32.mrf.mxu0
  %844 = vdwg.mxu0
  %845 = vmatprep.subr.mxu0 0.0
  %846 = vmatpush1.msra.mxu0 0.0
  %847 = vmatprep.subr.mxu0 0.0
  %848 = vmatpush1.msra.mxu0 0.0
  %849 = vmatprep.subr.mxu0 0.0
  %850 = vmatpush1.msra.mxu0 0.0
  %851 = vmatprep.subr.mxu0 0.0
  %852 = vmatpush1.msra.mxu0 0.0
  %853 = vmatprep.subr.mxu0 0.0
  %854 = vmatpush1.msra.mxu0 0.0
  %855 = vmatprep.subr.mxu0 0.0
  %856 = vmatpush1.msra.mxu0 0.0
  %857 = vmatprep.subr.mxu0 0.0
  %858 = vmatpush1.msra.mxu0 0.0
  %859 = vmatprep.subr.mxu0 0.0
  %860 = vmatpush1.msra.mxu0 0.0
  %861 = vmatprep.subr.mxu0 0.0
  %862 = vmatpush1.msra.mxu0 0.0
  %863 = vmatprep.subr.mxu0 0.0
  %864 = vmatpush1.msra.mxu0 0.0
  %865 = vmatprep.subr.mxu0 0.0
  %866 = vmatpush1.msra.mxu0 0.0
  %867 = vmatprep.subr.mxu0 0.0
  %868 = vmatpush1.msra.mxu0 0.0
  %869 = vmatprep.subr.mxu0 0.0
  %v870 = vand.u32 %v584, 4294901760
  %871 = vmatpush1.msra.mxu0 %v870
  %872 = vmatprep.subr.mxu0 0.0
  %v873 = vand.u32 %v583, 4294901760
  %874 = vmatpush1.msra.mxu0 %v873
  %875 = vmatprep.subr.mxu0 0.0
  %v876 = vand.u32 %v582, 4294901760
  %877 = vmatpush1.msra.mxu0 %v876
  %878 = vmatprep.subr.mxu0 0.0
  %v879 = vand.u32 %v581, 4294901760
  %880 = vmatpush1.msra.mxu0 %v879
  %881 = vmatprep.subr.mxu0 0.0
  %882 = vmatpush2.msra.mxu0 0.0
  %883 = vmatprep.subr.mxu0 0.0
  %884 = vmatpush2.msra.mxu0 0.0
  %885 = vmatprep.subr.mxu0 0.0
  %886 = vmatpush2.msra.mxu0 0.0
  %887 = vmatprep.subr.mxu0 0.0
  %888 = vmatpush2.msra.mxu0 0.0
  %889 = vmatprep.subr.mxu0 0.0
  %890 = vmatpush2.msra.mxu0 0.0
  %891 = vmatprep.subr.mxu0 0.0
  %892 = vmatpush2.msra.mxu0 0.0
  %893 = vmatprep.subr.mxu0 0.0
  %894 = vmatpush2.msra.mxu0 0.0
  %895 = vmatprep.subr.mxu0 0.0
  %896 = vmatpush2.msra.mxu0 0.0
  %897 = vmatprep.subr.mxu0 0.0
  %898 = vmatpush2.msra.mxu0 0.0
  %899 = vmatprep.subr.mxu0 0.0
  %900 = vmatpush2.msra.mxu0 0.0
  %901 = vmatprep.subr.mxu0 0.0
  %902 = vmatpush2.msra.mxu0 0.0
  %903 = vmatprep.subr.mxu0 0.0
  %904 = vmatpush2.msra.mxu0 0.0
  %905 = vmatprep.subr.mxu0 0.0
  %906 = vmatpush2.msra.mxu0 0.0
  %907 = vmatprep.subr.mxu0 0.0
  %908 = vmatpush2.msra.mxu0 0.0
  %909 = vmatprep.subr.mxu0 0.0
  %910 = vmatpush2.msra.mxu0 0.0
  %911 = vmatprep.subr.mxu0 0.0
  %912 = vmatpush2.msra.mxu0 0.0
  %913 = vmatprep.mubr.f32.mxu0 0.0
  %v914 = vand.u32 %v593, 4294901760
  %v915 = vsub.f32 %v593, %v914
  %v916 = vand.u32 %v915, 4294901760
  %917 = vmatmul.mubr.f32.gmra.mxu0 %v916
  %v918 = vpop.f32.mrf.mxu0
  %v919 = vadd.f32 %v842, %v918
  %v920 = vpop.f32.mrf.mxu0
  %921 = vdwg.mxu0
  %922 = vmatprep.subr.mxu0 0.0
  %923 = vmatpush1.msra.mxu0 0.0
  %924 = vmatprep.subr.mxu0 0.0
  %925 = vmatpush1.msra.mxu0 0.0
  %926 = vmatprep.subr.mxu0 0.0
  %927 = vmatpush1.msra.mxu0 0.0
  %928 = vmatprep.subr.mxu0 0.0
  %929 = vmatpush1.msra.mxu0 0.0
  %930 = vmatprep.subr.mxu0 0.0
  %931 = vmatpush1.msra.mxu0 0.0
  %932 = vmatprep.subr.mxu0 0.0
  %933 = vmatpush1.msra.mxu0 0.0
  %934 = vmatprep.subr.mxu0 0.0
  %935 = vmatpush1.msra.mxu0 0.0
  %936 = vmatprep.subr.mxu0 0.0
  %937 = vmatpush1.msra.mxu0 0.0
  %938 = vmatprep.subr.mxu0 0.0
  %939 = vmatpush1.msra.mxu0 0.0
  %940 = vmatprep.subr.mxu0 0.0
  %941 = vmatpush1.msra.mxu0 0.0
  %942 = vmatprep.subr.mxu0 0.0
  %943 = vmatpush1.msra.mxu0 0.0
  %944 = vmatprep.subr.mxu0 0.0
  %945 = vmatpush1.msra.mxu0 0.0
  %946 = vmatprep.subr.mxu0 0.0
  %v947 = vand.u32 %v584, 4294901760
  %v948 = vsub.f32 %v584, %v947
  %v949 = vand.u32 %v948, 4294901760
  %950 = vmatpush1.msra.mxu0 %v949
  %951 = vmatprep.subr.mxu0 0.0
  %v952 = vand.u32 %v583, 4294901760
  %v953 = vsub.f32 %v583, %v952
  %v954 = vand.u32 %v953, 4294901760
  %955 = vmatpush1.msra.mxu0 %v954
  %956 = vmatprep.subr.mxu0 0.0
  %v957 = vand.u32 %v582, 4294901760
  %v958 = vsub.f32 %v582, %v957
  %v959 = vand.u32 %v958, 4294901760
  %960 = vmatpush1.msra.mxu0 %v959
  %961 = vmatprep.subr.mxu0 0.0
  %v962 = vand.u32 %v581, 4294901760
  %v963 = vsub.f32 %v581, %v962
  %v964 = vand.u32 %v963, 4294901760
  %965 = vmatpush1.msra.mxu0 %v964
  %966 = vmatprep.subr.mxu0 0.0
  %967 = vmatpush2.msra.mxu0 0.0
  %968 = vmatprep.subr.mxu0 0.0
  %969 = vmatpush2.msra.mxu0 0.0
  %970 = vmatprep.subr.mxu0 0.0
  %971 = vmatpush2.msra.mxu0 0.0
  %972 = vmatprep.subr.mxu0 0.0
  %973 = vmatpush2.msra.mxu0 0.0
  %974 = vmatprep.subr.mxu0 0.0
  %975 = vmatpush2.msra.mxu0 0.0
  %976 = vmatprep.subr.mxu0 0.0
  %977 = vmatpush2.msra.mxu0 0.0
  %978 = vmatprep.subr.mxu0 0.0
  %979 = vmatpush2.msra.mxu0 0.0
  %980 = vmatprep.subr.mxu0 0.0
  %981 = vmatpush2.msra.mxu0 0.0
  %982 = vmatprep.subr.mxu0 0.0
  %983 = vmatpush2.msra.mxu0 0.0
  %984 = vmatprep.subr.mxu0 0.0
  %985 = vmatpush2.msra.mxu0 0.0
  %986 = vmatprep.subr.mxu0 0.0
  %987 = vmatpush2.msra.mxu0 0.0
  %988 = vmatprep.subr.mxu0 0.0
  %989 = vmatpush2.msra.mxu0 0.0
  %990 = vmatprep.subr.mxu0 0.0
  %991 = vmatpush2.msra.mxu0 0.0
  %992 = vmatprep.subr.mxu0 0.0
  %993 = vmatpush2.msra.mxu0 0.0
  %994 = vmatprep.subr.mxu0 0.0
  %995 = vmatpush2.msra.mxu0 0.0
  %996 = vmatprep.subr.mxu0 0.0
  %997 = vmatpush2.msra.mxu0 0.0
  %998 = vmatprep.mubr.f32.mxu0 0.0
  %v999 = vand.u32 %v593, 4294901760
  %1000 = vmatmul.mubr.f32.gmra.mxu0 %v999
  %v1001 = vpop.f32.mrf.mxu0
  %v1002 = vadd.f32 %v919, %v1001
  %v1003 = vpop.f32.mrf.mxu0
  %1004 = vdwg.mxu0
  %1005 = vmatprep.subr.mxu0 0.0
  %1006 = vmatpush1.msra.mxu0 0.0
  %1007 = vmatprep.subr.mxu0 0.0
  %1008 = vmatpush1.msra.mxu0 0.0
  %1009 = vmatprep.subr.mxu0 0.0
  %1010 = vmatpush1.msra.mxu0 0.0
  %1011 = vmatprep.subr.mxu0 0.0
  %1012 = vmatpush1.msra.mxu0 0.0
  %1013 = vmatprep.subr.mxu0 0.0
  %1014 = vmatpush1.msra.mxu0 0.0
  %1015 = vmatprep.subr.mxu0 0.0
  %1016 = vmatpush1.msra.mxu0 0.0
  %1017 = vmatprep.subr.mxu0 0.0
  %1018 = vmatpush1.msra.mxu0 0.0
  %1019 = vmatprep.subr.mxu0 0.0
  %1020 = vmatpush1.msra.mxu0 0.0
  %1021 = vmatprep.subr.mxu0 0.0
  %1022 = vmatpush1.msra.mxu0 0.0
  %1023 = vmatprep.subr.mxu0 0.0
  %1024 = vmatpush1.msra.mxu0 0.0
  %1025 = vmatprep.subr.mxu0 0.0
  %1026 = vmatpush1.msra.mxu0 0.0
  %1027 = vmatprep.subr.mxu0 0.0
  %1028 = vmatpush1.msra.mxu0 0.0
  %1029 = vmatprep.subr.mxu0 0.0
  %v1030 = vand.u32 %v584, 4294901760
  %1031 = vmatpush1.msra.mxu0 %v1030
  %1032 = vmatprep.subr.mxu0 0.0
  %v1033 = vand.u32 %v583, 4294901760
  %1034 = vmatpush1.msra.mxu0 %v1033
  %1035 = vmatprep.subr.mxu0 0.0
  %v1036 = vand.u32 %v582, 4294901760
  %1037 = vmatpush1.msra.mxu0 %v1036
  %1038 = vmatprep.subr.mxu0 0.0
  %v1039 = vand.u32 %v581, 4294901760
  %1040 = vmatpush1.msra.mxu0 %v1039
  %1041 = vmatprep.subr.mxu0 0.0
  %1042 = vmatpush2.msra.mxu0 0.0
  %1043 = vmatprep.subr.mxu0 0.0
  %1044 = vmatpush2.msra.mxu0 0.0
  %1045 = vmatprep.subr.mxu0 0.0
  %1046 = vmatpush2.msra.mxu0 0.0
  %1047 = vmatprep.subr.mxu0 0.0
  %1048 = vmatpush2.msra.mxu0 0.0
  %1049 = vmatprep.subr.mxu0 0.0
  %1050 = vmatpush2.msra.mxu0 0.0
  %1051 = vmatprep.subr.mxu0 0.0
  %1052 = vmatpush2.msra.mxu0 0.0
  %1053 = vmatprep.subr.mxu0 0.0
  %1054 = vmatpush2.msra.mxu0 0.0
  %1055 = vmatprep.subr.mxu0 0.0
  %1056 = vmatpush2.msra.mxu0 0.0
  %1057 = vmatprep.subr.mxu0 0.0
  %1058 = vmatpush2.msra.mxu0 0.0
  %1059 = vmatprep.subr.mxu0 0.0
  %1060 = vmatpush2.msra.mxu0 0.0
  %1061 = vmatprep.subr.mxu0 0.0
  %1062 = vmatpush2.msra.mxu0 0.0
  %1063 = vmatprep.subr.mxu0 0.0
  %1064 = vmatpush2.msra.mxu0 0.0
  %1065 = vmatprep.subr.mxu0 0.0
  %1066 = vmatpush2.msra.mxu0 0.0
  %1067 = vmatprep.subr.mxu0 0.0
  %1068 = vmatpush2.msra.mxu0 0.0
  %1069 = vmatprep.subr.mxu0 0.0
  %1070 = vmatpush2.msra.mxu0 0.0
  %1071 = vmatprep.subr.mxu0 0.0
  %1072 = vmatpush2.msra.mxu0 0.0
  %1073 = vmatprep.mubr.f32.mxu0 0.0
  %v1074 = vand.u32 %v593, 4294901760
  %1075 = vmatmul.mubr.f32.gmra.mxu0 %v1074
  %v1076 = vpop.f32.mrf.mxu0
  %v1077 = vadd.f32 %v1002, %v1076
  %v1078 = vpop.f32.mrf.mxu0
  %1079 = vdwg.mxu0
  %vm1080 = vcmask 31744
  %1081 = vst.msk [vmem:[%s7] sm:$0xff] %vm1080, %v1077
  // Predicated region
  $region30: #{tpu_custom_call.1} parent=0 // pred_check
    _
  $region31: #{tpu_custom_call.1} parent=0 // pred_check_branch
    %1083 = sbr.rel (0) target = $region33
  $region32: #{tpu_custom_call.1} parent=0 // pred_region
    _
  $region33: #{tpu_custom_call.1} parent=0 // pred_fallthru
    _
  // Predicated region
  $region34: #{tpu_custom_call.1} parent=0 // pred_check
    _
  $region35: #{tpu_custom_call.1} parent=0 // pred_check_branch
    %1085 = sbr.rel (0) target = $region37
  $region36: #{tpu_custom_call.1} parent=0 // pred_region
    _
  $region37: #{tpu_custom_call.1} parent=0 // pred_fallthru
    _

</llo_original>
